<compile_context>
chip_gen: v6e
topology: v6e:2x2x1
jax: 0.10.0
libtpu: 0.0.40
codegen_flags: <defaults>
</compile_context>

<pallas_src>
import functools

import jax
import jax.numpy as jnp
from jax.experimental import pallas as pl
from jax.experimental.pallas import tpu as pltpu


_SINGLE_K_MAX = 2048   # largest padded-IN handled as one K block
_TK = 512              # K tile when IN is larger than _SINGLE_K_MAX


def _round_up(v, m):
    return (v + m - 1) // m * m


def _pick_tn(Np, m_blocks):
    """Largest multiple of 128 dividing Np (<=512); ensure >=2 parallel blocks
    (v7x has 2 TensorCores sharded over the 'parallel' grid axes)."""
    tn = 128
    c = min(512, Np)
    while c >= 128:
        if Np % c == 0:
            tn = c
            break
        c -= 128
    if m_blocks * (Np // tn) < 2 and Np >= 256:
        c = (min(tn, Np // 2) // 128) * 128
        while c >= 128 and Np % c != 0:
            c -= 128
        if c >= 128:
            tn = c
    return tn


# ---------------------------------------------------------------------------
# Kernels (slice loop statically unrolled inside the body)
# ---------------------------------------------------------------------------
def _bitsliced_adc_kernel(x_ref, w_ref, b_ref, o_ref, *, adc_max, num_slices):
    """Grid = (M tiles, N tiles); IN fits in a single K block."""
    x = x_ref[...]                                   # (tm, Kp) f32
    w_i32 = w_ref[...].astype(jnp.int32)             # packed bits, (Kp, tn)
    total = jnp.zeros(o_ref.shape, jnp.float32)
    for s in range(num_slices):                      # static unroll, S small
        w_s = ((w_i32 >> s) & 1).astype(jnp.float32)
        out = jnp.dot(x, w_s, preferred_element_type=jnp.float32) + b_ref[s]
        # round(out*adc_max) * (2^s/adc_max) == 2^s * adc_convert(out) (1 ulp)
        total += jnp.round(out * adc_max) * ((2.0 ** s) / adc_max)
    o_ref[...] = total


def _bitsliced_adc_kernel_ktiled(x_ref, w_ref, b_ref, o_ref, acc_ref, *,
                                 adc_max, num_slices):
    """Grid = (M tiles, N tiles, K tiles); ADC applied after the full K sum."""
    k = pl.program_id(2)

    @pl.when(k == 0)
    def _():
        acc_ref[...] = jnp.zeros_like(acc_ref)

    x = x_ref[...]                                   # (tm, tk) f32
    w_i32 = w_ref[...].astype(jnp.int32)             # (tk, tn)
    for s in range(num_slices):
        w_s = ((w_i32 >> s) & 1).astype(jnp.float32)
        acc_ref[s] += jnp.dot(x, w_s, preferred_element_type=jnp.float32)

    @pl.when(k == pl.num_programs(2) - 1)
    def _():
        total = jnp.zeros(o_ref.shape, jnp.float32)
        for s in range(num_slices):
            out = acc_ref[s] + b_ref[s]
            total += jnp.round(out * adc_max) * ((2.0 ** s) / adc_max)
        o_ref[...] = total


# ---------------------------------------------------------------------------
# One-time parameter packing (kept OUT of the per-call forward path)
# ---------------------------------------------------------------------------
def pack_params(w_slices, b_slices):
    """w_slices: (S, IN, OUT) 0/1-valued; b_slices: (S, 1, OUT).
    Returns (w_packed (Kp, Np) int8/int32 with bit s = slice s, b (S,1,Np) f32)."""
    S, IN, OUT = w_slices.shape
    Kp = _round_up(IN, 32)                       # int8 sublane tiling is (32,128)
    if Kp > _SINGLE_K_MAX:
        Kp = _round_up(IN, _TK)
    Np = _round_up(OUT, 128)                     # lane-dense output columns

    bits = jnp.round(w_slices).astype(jnp.int32)                      # (S,IN,OUT)
    shifts = jnp.left_shift(jnp.int32(1),
                            jnp.arange(S, dtype=jnp.int32)).reshape(S, 1, 1)
    packed = jnp.sum(bits * shifts, axis=0)                           # (IN, OUT)
    packed = packed.astype(jnp.int8 if S <= 8 else jnp.int32)
    packed = jnp.pad(packed, ((0, Kp - IN), (0, Np - OUT)))

    b = jnp.pad(b_slices.astype(jnp.float32), ((0, 0), (0, 0), (0, Np - OUT)))
    return packed, b


# ---------------------------------------------------------------------------
# Forward wrapper
# ---------------------------------------------------------------------------
@functools.partial(jax.jit, static_argnames=("out_features", "adc_bits"))
def bitsliced_linear_adc(x, w_packed, b_padded, *, out_features, adc_bits=8):
    """x: (B, IN) f32; w_packed/b_padded from pack_params()."""
    B, IN = x.shape
    Kp, Np = w_packed.shape
    S = b_padded.shape[0]
    assert Kp >= IN and Np >= out_features
    adc_max = float(2 ** adc_bits - 1)

    tm = min(128, _round_up(B, 8))               # sublane-aligned batch tile
    Mp = _round_up(B, tm)
    tn = _pick_tn(Np, Mp // tm)

    xp = jnp.pad(x, ((0, Mp - B), (0, Kp - IN)))  # only x is padded per call

    cost = pl.CostEstimate(
        flops=2 * Mp * Kp * Np * S,
        transcendentals=0,
        bytes_accessed=(Mp * Kp * 4 + Kp * Np * w_packed.dtype.itemsize
                        + S * Np * 4 + Mp * Np * 4))

    if Kp <= _SINGLE_K_MAX:
        kernel = functools.partial(_bitsliced_adc_kernel,
                                   adc_max=adc_max, num_slices=S)
        grid = (Mp // tm, Np // tn)
        in_specs = [
            pl.BlockSpec((tm, Kp), lambda i, j: (i, 0)),
            pl.BlockSpec((Kp, tn), lambda i, j: (0, j)),
            pl.BlockSpec((S, 1, tn), lambda i, j: (0, 0, j)),
        ]
        out_specs = pl.BlockSpec((tm, tn), lambda i, j: (i, j))
        scratch_shapes = []
        dims = ("parallel", "parallel")
    else:
        tk = _TK
        assert Kp % tk == 0
        kernel = functools.partial(_bitsliced_adc_kernel_ktiled,
                                   adc_max=adc_max, num_slices=S)
        grid = (Mp // tm, Np // tn, Kp // tk)
        in_specs = [
            pl.BlockSpec((tm, tk), lambda i, j, k: (i, k)),
            pl.BlockSpec((tk, tn), lambda i, j, k: (k, j)),
            pl.BlockSpec((S, 1, tn), lambda i, j, k: (0, 0, j)),
        ]
        out_specs = pl.BlockSpec((tm, tn), lambda i, j, k: (i, j))
        scratch_shapes = [pltpu.VMEM((S, tm, tn), jnp.float32)]
        dims = ("parallel", "parallel", "arbitrary")

    out = pl.pallas_call(
        kernel,
        out_shape=jax.ShapeDtypeStruct((Mp, Np), jnp.float32),
        grid_spec=pltpu.PrefetchScalarGridSpec(
            num_scalar_prefetch=0,
            grid=grid,
            in_specs=in_specs,
            out_specs=out_specs,
            scratch_shapes=scratch_shapes),
        compiler_params=pltpu.CompilerParams(
            dimension_semantics=dims,
            vmem_limit_bytes=32 * 1024 * 1024),   # > v5e's 16 MiB default, v7x-safe
        cost_estimate=cost,
    )(xp, w_packed, b_padded)

    return out[:B, :out_features]


# ---------------------------------------------------------------------------
# Synthetic params (mirrors BitSlicedLinear._init_weights) and JAX reference
# ---------------------------------------------------------------------------
def make_params(key, in_features, out_features, num_slices):
    kw, kb = jax.random.split(key)
    w0 = jax.random.uniform(kw, (out_features, in_features),
                            minval=-1.0, maxval=1.0, dtype=jnp.float32)
    normalized = (w0 + 1.0) / 2.0
    scaled = jnp.round(normalized * (2 ** num_slices - 1)).astype(jnp.int32)
    bits = [((scaled >> i) & 1) for i in range(num_slices)]
    w_bits = jnp.stack(bits, axis=0).astype(jnp.float32)      # (S, OUT, IN) 0/1
    w_slices = jnp.transpose(w_bits, (0, 2, 1))               # (S, IN, OUT)
    bound = 1.0 / (in_features ** 0.5)
    b_slices = jax.random.uniform(kb, (num_slices, 1, out_features),
                                  minval=-bound, maxval=bound, dtype=jnp.float32)
    return w_slices, b_slices


def reference(x, w_slices, b_slices, adc_bits=8):
    adc_max = float(2 ** adc_bits - 1)
    S = w_slices.shape[0]
    y = jnp.zeros((x.shape[0], w_slices.shape[2]), jnp.float32)
    for i in range(S):
        out = x @ w_slices[i] + b_slices[i]
        adc = jnp.round(out * adc_max) / adc_max
        y = y + float(2 ** i) * adc
    return y


if __name__ == "__main__":
    key = jax.random.PRNGKey(0)
    k_p1, k_x1, k_p2, k_x2 = jax.random.split(key, 4)
    ADC = 8

    # --- small, module-sized problem: single-K-block kernel path ---
    B1, IN1, OUT1, S1 = 2, 32, 32, 4
    w1, b1 = make_params(k_p1, IN1, OUT1, S1)
    wp1, bp1 = pack_params(w1, b1)
    x1 = jax.random.normal(k_x1, (B1, IN1), dtype=jnp.float32)
    y1 = jax.block_until_ready(
        bitsliced_linear_adc(x1, wp1, bp1, out_features=OUT1, adc_bits=ADC))
    y1_ref = reference(x1, w1, b1, adc_bits=ADC)
    assert y1.shape == (B1, OUT1)
    assert jnp.allclose(y1, y1_ref, atol=1e-4, rtol=1e-4), \
        float(jnp.max(jnp.abs(y1 - y1_ref)))

    # --- wide-IN problem: K-tiled accumulator path + non-pow2 Np(=384) tiling ---
    B2, IN2, OUT2, S2 = 4, 2100, 384, 3
    w2, b2 = make_params(k_p2, IN2, OUT2, S2)
    wp2, bp2 = pack_params(w2, b2)
    x2 = jax.random.normal(k_x2, (B2, IN2), dtype=jnp.float32)
    y2 = jax.block_until_ready(
        bitsliced_linear_adc(x2, wp2, bp2, out_features=OUT2, adc_bits=ADC))
    y2_ref = reference(x2, w2, b2, adc_bits=ADC)
    assert y2.shape == (B2, OUT2)
    # f32 accumulation-order differences can flip an ADC LSB; worst case per
    # element is (2^S - 1)/adc_max ~ 0.027, so 5e-2 is safe and still meaningful.
    assert jnp.allclose(y2, y2_ref, atol=5e-2, rtol=1e-3), \
        float(jnp.max(jnp.abs(y2 - y2_ref)))

    print("KERNEL_OK")
</pallas_src>

<mosaic_0001>
module attributes {stable_mosaic.version = 11 : i64} {
  func.func @_bitsliced_adc_kernel(%arg0: i32, %arg1: i32, %arg2: memref<8x32xf32, #tpu.memory_space<vmem>>, %arg3: memref<32x128xi8, #tpu.memory_space<vmem>>, %arg4: memref<4x1x128xf32, #tpu.memory_space<vmem>>, %arg5: memref<8x128xf32, #tpu.memory_space<vmem>>) attributes {dimension_semantics = [#tpu.dimension_semantics<parallel>, #tpu.dimension_semantics<parallel>], iteration_bounds = array<i64: 1, 1>, scalar_prefetch = 0 : i64, scratch_operands = 0 : i64, tpu.core_type = #tpu.core_type<tc>, window_params = [{transform_indices = @transform_0, window_bounds = array<i64: 8, 32>}, {transform_indices = @transform_1, window_bounds = array<i64: 32, 128>}, {transform_indices = @transform_2, window_bounds = array<i64: 4, 1, 128>}, {transform_indices = @transform_3, window_bounds = array<i64: 8, 128>}]} {
    %c0 = arith.constant 0 : index
    %c0_0 = arith.constant 0 : index
    %0 = vector.load %arg2[%c0, %c0_0] : memref<8x32xf32, #tpu.memory_space<vmem>>, vector<8x32xf32>
    %c0_1 = arith.constant 0 : index
    %c0_2 = arith.constant 0 : index
    %1 = vector.load %arg3[%c0_1, %c0_2] : memref<32x128xi8, #tpu.memory_space<vmem>>, vector<32x128xi8>
    %2 = arith.extsi %1 : vector<32x128xi8> to vector<32x128xi32>
    %cst = arith.constant 0.000000e+00 : f32
    %3 = vector.broadcast %cst : f32 to vector<8x128xf32>
    %c0_i32 = arith.constant 0 : i32
    %4 = vector.broadcast %c0_i32 : i32 to vector<32x128xi32>
    %5 = arith.shrsi %2, %4 : vector<32x128xi32>
    %c1_i32 = arith.constant 1 : i32
    %6 = vector.broadcast %c1_i32 : i32 to vector<32x128xi32>
    %7 = arith.andi %5, %6 : vector<32x128xi32>
    %8 = arith.sitofp %7 : vector<32x128xi32> to vector<32x128xf32>
    %cst_3 = arith.constant dense<0.000000e+00> : vector<8x128xf32>
    %9 = tpu.matmul %0, %8, %cst_3 {dimension_numbers = #tpu.dot_dimension_numbers<[1], [0], [0], [1], [0, 0, 1, 1], [], []>} : vector<8x32xf32>, vector<32x128xf32>, vector<8x128xf32> -> vector<8x128xf32>
    %c0_4 = arith.constant 0 : index
    %c0_5 = arith.constant 0 : index
    %c0_6 = arith.constant 0 : index
    %10 = vector.load %arg4[%c0_4, %c0_5, %c0_6] : memref<4x1x128xf32, #tpu.memory_space<vmem>>, vector<1x1x128xf32>
    %11 = vector.shape_cast %10 : vector<1x1x128xf32> to vector<1x128xf32>
    %12 = vector.broadcast %11 : vector<1x128xf32> to vector<8x128xf32>
    %13 = arith.addf %9, %12 : vector<8x128xf32>
    %cst_7 = arith.constant 2.550000e+02 : f32
    %14 = vector.broadcast %cst_7 : f32 to vector<8x128xf32>
    %15 = arith.mulf %13, %14 : vector<8x128xf32>
    %16 = math.roundeven %15 : vector<8x128xf32>
    %cst_8 = arith.constant 0.00392156886 : f32
    %17 = vector.broadcast %cst_8 : f32 to vector<8x128xf32>
    %18 = arith.mulf %16, %17 : vector<8x128xf32>
    %19 = arith.addf %3, %18 : vector<8x128xf32>
    %c1_i32_9 = arith.constant 1 : i32
    %20 = vector.broadcast %c1_i32_9 : i32 to vector<32x128xi32>
    %21 = arith.shrsi %2, %20 : vector<32x128xi32>
    %c1_i32_10 = arith.constant 1 : i32
    %22 = vector.broadcast %c1_i32_10 : i32 to vector<32x128xi32>
    %23 = arith.andi %21, %22 : vector<32x128xi32>
    %24 = arith.sitofp %23 : vector<32x128xi32> to vector<32x128xf32>
    %cst_11 = arith.constant dense<0.000000e+00> : vector<8x128xf32>
    %25 = tpu.matmul %0, %24, %cst_11 {dimension_numbers = #tpu.dot_dimension_numbers<[1], [0], [0], [1], [0, 0, 1, 1], [], []>} : vector<8x32xf32>, vector<32x128xf32>, vector<8x128xf32> -> vector<8x128xf32>
    %c1 = arith.constant 1 : index
    %c0_12 = arith.constant 0 : index
    %c0_13 = arith.constant 0 : index
    %26 = vector.load %arg4[%c1, %c0_12, %c0_13] : memref<4x1x128xf32, #tpu.memory_space<vmem>>, vector<1x1x128xf32>
    %27 = vector.shape_cast %26 : vector<1x1x128xf32> to vector<1x128xf32>
    %28 = vector.broadcast %27 : vector<1x128xf32> to vector<8x128xf32>
    %29 = arith.addf %25, %28 : vector<8x128xf32>
    %cst_14 = arith.constant 2.550000e+02 : f32
    %30 = vector.broadcast %cst_14 : f32 to vector<8x128xf32>
    %31 = arith.mulf %29, %30 : vector<8x128xf32>
    %32 = math.roundeven %31 : vector<8x128xf32>
    %cst_15 = arith.constant 0.00784313772 : f32
    %33 = vector.broadcast %cst_15 : f32 to vector<8x128xf32>
    %34 = arith.mulf %32, %33 : vector<8x128xf32>
    %35 = arith.addf %19, %34 : vector<8x128xf32>
    %c2_i32 = arith.constant 2 : i32
    %36 = vector.broadcast %c2_i32 : i32 to vector<32x128xi32>
    %37 = arith.shrsi %2, %36 : vector<32x128xi32>
    %c1_i32_16 = arith.constant 1 : i32
    %38 = vector.broadcast %c1_i32_16 : i32 to vector<32x128xi32>
    %39 = arith.andi %37, %38 : vector<32x128xi32>
    %40 = arith.sitofp %39 : vector<32x128xi32> to vector<32x128xf32>
    %cst_17 = arith.constant dense<0.000000e+00> : vector<8x128xf32>
    %41 = tpu.matmul %0, %40, %cst_17 {dimension_numbers = #tpu.dot_dimension_numbers<[1], [0], [0], [1], [0, 0, 1, 1], [], []>} : vector<8x32xf32>, vector<32x128xf32>, vector<8x128xf32> -> vector<8x128xf32>
    %c2 = arith.constant 2 : index
    %c0_18 = arith.constant 0 : index
    %c0_19 = arith.constant 0 : index
    %42 = vector.load %arg4[%c2, %c0_18, %c0_19] : memref<4x1x128xf32, #tpu.memory_space<vmem>>, vector<1x1x128xf32>
    %43 = vector.shape_cast %42 : vector<1x1x128xf32> to vector<1x128xf32>
    %44 = vector.broadcast %43 : vector<1x128xf32> to vector<8x128xf32>
    %45 = arith.addf %41, %44 : vector<8x128xf32>
    %cst_20 = arith.constant 2.550000e+02 : f32
    %46 = vector.broadcast %cst_20 : f32 to vector<8x128xf32>
    %47 = arith.mulf %45, %46 : vector<8x128xf32>
    %48 = math.roundeven %47 : vector<8x128xf32>
    %cst_21 = arith.constant 0.0156862754 : f32
    %49 = vector.broadcast %cst_21 : f32 to vector<8x128xf32>
    %50 = arith.mulf %48, %49 : vector<8x128xf32>
    %51 = arith.addf %35, %50 : vector<8x128xf32>
    %c3_i32 = arith.constant 3 : i32
    %52 = vector.broadcast %c3_i32 : i32 to vector<32x128xi32>
    %53 = arith.shrsi %2, %52 : vector<32x128xi32>
    %c1_i32_22 = arith.constant 1 : i32
    %54 = vector.broadcast %c1_i32_22 : i32 to vector<32x128xi32>
    %55 = arith.andi %53, %54 : vector<32x128xi32>
    %56 = arith.sitofp %55 : vector<32x128xi32> to vector<32x128xf32>
    %cst_23 = arith.constant dense<0.000000e+00> : vector<8x128xf32>
    %57 = tpu.matmul %0, %56, %cst_23 {dimension_numbers = #tpu.dot_dimension_numbers<[1], [0], [0], [1], [0, 0, 1, 1], [], []>} : vector<8x32xf32>, vector<32x128xf32>, vector<8x128xf32> -> vector<8x128xf32>
    %c3 = arith.constant 3 : index
    %c0_24 = arith.constant 0 : index
    %c0_25 = arith.constant 0 : index
    %58 = vector.load %arg4[%c3, %c0_24, %c0_25] : memref<4x1x128xf32, #tpu.memory_space<vmem>>, vector<1x1x128xf32>
    %59 = vector.shape_cast %58 : vector<1x1x128xf32> to vector<1x128xf32>
    %60 = vector.broadcast %59 : vector<1x128xf32> to vector<8x128xf32>
    %61 = arith.addf %57, %60 : vector<8x128xf32>
    %cst_26 = arith.constant 2.550000e+02 : f32
    %62 = vector.broadcast %cst_26 : f32 to vector<8x128xf32>
    %63 = arith.mulf %61, %62 : vector<8x128xf32>
    %64 = math.roundeven %63 : vector<8x128xf32>
    %cst_27 = arith.constant 0.0313725509 : f32
    %65 = vector.broadcast %cst_27 : f32 to vector<8x128xf32>
    %66 = arith.mulf %64, %65 : vector<8x128xf32>
    %67 = arith.addf %51, %66 : vector<8x128xf32>
    %c0_28 = arith.constant 0 : index
    %c0_29 = arith.constant 0 : index
    %68 = vector.load %arg5[%c0_28, %c0_29] : memref<8x128xf32, #tpu.memory_space<vmem>>, vector<8x128xf32>
    tpu.vector_store %arg5[%c0_28, %c0_29], %67 {strides = array<i32>} : memref<8x128xf32, #tpu.memory_space<vmem>>, vector<8x128xf32>,
    return
  }
  func.func @transform_0(%arg0: i32, %arg1: i32) -> (i32, i32) {
    %c0_i32 = arith.constant 0 : i32
    %c0_i32_0 = arith.constant 0 : i32
    return %arg0, %c0_i32 : i32, i32
  }
  func.func @transform_1(%arg0: i32, %arg1: i32) -> (i32, i32) {
    %c0_i32 = arith.constant 0 : i32
    %c0_i32_0 = arith.constant 0 : i32
    return %c0_i32, %arg1 : i32, i32
  }
  func.func @transform_2(%arg0: i32, %arg1: i32) -> (i32, i32, i32) {
    %c0_i32 = arith.constant 0 : i32
    %c0_i32_0 = arith.constant 0 : i32
    %c0_i32_1 = arith.constant 0 : i32
    return %c0_i32, %c0_i32_0, %arg1 : i32, i32, i32
  }
  func.func @transform_3(%arg0: i32, %arg1: i32) -> (i32, i32) {
    %c0_i32 = arith.constant 0 : i32
    return %arg0, %arg1 : i32, i32
  }
}

</mosaic_0001>

<llo_original>
// kernel: bitsliced_linear_adc.1
$region0: #{bitsliced_linear_adc.1}
  #allocation0 [shape = 'u32[]', space=smem, size = 0x4, offset = 0x4, fixed_abs, tag = 'smem constant byte address 0x4 - core index']
  #allocation1 [shape = 'u32[144,128]{1,0:T(1,128)}', space=vmem, size = 0x12000, scoped, tag = 'internal scratch']
  %s0 = inlined_call_operand.vmem [shape: f32[8,32], index: 0, kind: input, shape index: {}]
  %s1 = inlined_call_operand.vmem [shape: s8[32,128], index: 1, kind: input, shape index: {}]
  %s2 = inlined_call_operand.vmem [shape: f32[4,1,128], index: 2, kind: input, shape index: {}]
  %s3 = inlined_call_operand.vmem [shape: f32[8,128], index: 3, kind: output, shape index: {}]
  %s4 = sld [smem:[#allocation0]]
  $region22: #{bitsliced_linear_adc.1} parent=0
    _
  %s6 = ssub.s32 1, %s4
  %s7 = scalar_select 0, %s6, %s4
  // Predicated region
  $region2: #{bitsliced_linear_adc.1} parent=0 // pred_check
    _
  $region3: #{bitsliced_linear_adc.1} parent=0 // pred_check_branch
    %9 = sbr.rel (0) target = $region5
  $region4: #{bitsliced_linear_adc.1} parent=0 // pred_region
    _
  $region5: #{bitsliced_linear_adc.1} parent=0 // pred_fallthru
    _
  // Predicated region
  $region6: #{bitsliced_linear_adc.1} parent=0 // pred_check
    _
  $region7: #{bitsliced_linear_adc.1} parent=0 // pred_check_branch
    %11 = sbr.rel (0) target = $region9
  $region8: #{bitsliced_linear_adc.1} parent=0 // pred_region
    _
  $region9: #{bitsliced_linear_adc.1} parent=0 // pred_fallthru
    _
  // Predicated region
  $region10: #{bitsliced_linear_adc.1} parent=0 // pred_check
    _
  $region11: #{bitsliced_linear_adc.1} parent=0 // pred_check_branch
    %13 = sbr.rel (0) target = $region13
  $region12: #{bitsliced_linear_adc.1} parent=0 // pred_region
    _
  $region13: #{bitsliced_linear_adc.1} parent=0 // pred_fallthru
    _
  %v14 = vld [vmem:[%s0] sm:$0xff]
  %v15 = vld [vmem:[%s1] sm:$0xff]
  %v16 = vunpack.c.0.s8 %v15
  %v17 = vunpack.c.1.s8 %v15
  %v18 = vunpack.c.2.s8 %v15
  %v19 = vunpack.c.3.s8 %v15
  %v20 = vand.u32 %v16, 1
  %v21 = vand.u32 %v17, 1
  %v22 = vand.u32 %v18, 1
  %v23 = vand.u32 %v19, 1
  %v24 = vcvt.s32.f32 %v20
  %v25 = vcvt.s32.f32 %v21
  %v26 = vcvt.s32.f32 %v22
  %v27 = vcvt.s32.f32 %v23
  %v28 = vld [vmem:[%s2] sm:$0x1]
  %v30 = vlaneseq
  %v31 = vshrl.u32 %v30, 7
  %v32 = vsub.s32 0, %v31
  %v33 = vrot.slane %v28, %v32
  %vm35 = vcmask 261120
  %v37 = vsel %vm35, %v14, 0
  %39 = vmatprep.subr.mxu0 0.0
  %40 = vmatpush1.msra.mxu0 0.0
  %41 = vmatprep.subr.mxu0 0.0
  %42 = vmatpush1.msra.mxu0 0.0
  %43 = vmatprep.subr.mxu0 0.0
  %44 = vmatpush1.msra.mxu0 0.0
  %45 = vmatprep.subr.mxu0 0.0
  %46 = vmatpush1.msra.mxu0 0.0
  %47 = vmatprep.subr.mxu0 0.0
  %48 = vmatpush1.msra.mxu0 0.0
  %49 = vmatprep.subr.mxu0 0.0
  %50 = vmatpush1.msra.mxu0 0.0
  %51 = vmatprep.subr.mxu0 0.0
  %52 = vmatpush1.msra.mxu0 0.0
  %53 = vmatprep.subr.mxu0 0.0
  %54 = vmatpush1.msra.mxu0 0.0
  %55 = vmatprep.subr.mxu0 0.0
  %56 = vmatpush1.msra.mxu0 0.0
  %57 = vmatprep.subr.mxu0 0.0
  %58 = vmatpush1.msra.mxu0 0.0
  %59 = vmatprep.subr.mxu0 0.0
  %60 = vmatpush1.msra.mxu0 0.0
  %61 = vmatprep.subr.mxu0 0.0
  %62 = vmatpush1.msra.mxu0 0.0
  %63 = vmatprep.subr.mxu0 0.0
  %64 = vmatpush1.msra.mxu0 %v27
  %65 = vmatprep.subr.mxu0 0.0
  %66 = vmatpush1.msra.mxu0 %v26
  %67 = vmatprep.subr.mxu0 0.0
  %68 = vmatpush1.msra.mxu0 %v25
  %69 = vmatprep.subr.mxu0 0.0
  %70 = vmatpush1.msra.mxu0 %v24
  %71 = vmatprep.subr.mxu0 0.0
  %72 = vmatpush2.msra.mxu0 0.0
  %73 = vmatprep.subr.mxu0 0.0
  %74 = vmatpush2.msra.mxu0 0.0
  %75 = vmatprep.subr.mxu0 0.0
  %76 = vmatpush2.msra.mxu0 0.0
  %77 = vmatprep.subr.mxu0 0.0
  %78 = vmatpush2.msra.mxu0 0.0
  %79 = vmatprep.subr.mxu0 0.0
  %80 = vmatpush2.msra.mxu0 0.0
  %81 = vmatprep.subr.mxu0 0.0
  %82 = vmatpush2.msra.mxu0 0.0
  %83 = vmatprep.subr.mxu0 0.0
  %84 = vmatpush2.msra.mxu0 0.0
  %85 = vmatprep.subr.mxu0 0.0
  %86 = vmatpush2.msra.mxu0 0.0
  %87 = vmatprep.subr.mxu0 0.0
  %88 = vmatpush2.msra.mxu0 0.0
  %89 = vmatprep.subr.mxu0 0.0
  %90 = vmatpush2.msra.mxu0 0.0
  %91 = vmatprep.subr.mxu0 0.0
  %92 = vmatpush2.msra.mxu0 0.0
  %93 = vmatprep.subr.mxu0 0.0
  %94 = vmatpush2.msra.mxu0 0.0
  %95 = vmatprep.subr.mxu0 0.0
  %96 = vmatpush2.msra.mxu0 0.0
  %97 = vmatprep.subr.mxu0 0.0
  %98 = vmatpush2.msra.mxu0 0.0
  %99 = vmatprep.subr.mxu0 0.0
  %100 = vmatpush2.msra.mxu0 0.0
  %101 = vmatprep.subr.mxu0 0.0
  %102 = vmatpush2.msra.mxu0 0.0
  %103 = vmatprep.mubr.f32.mxu0 0.0
  %104 = vmatmul.mubr.f32.gmra.mxu0 %v37
  %v105 = vpop.f32.mrf.mxu0
  %v106 = vadd.f32 %v33, %v105
  %v107 = vpop.f32.mrf.mxu0
  %108 = vdwg.mxu0
  %v109 = vmul.f32 %v106, 255.0
  %v110 = vround.ne.pseudo %v109
  %v111 = vmul.f32 %v110, 0.003921569
  %v112 = vadd.f32 %v111, 0.0
  %v113 = vshra.s32 %v16, 1
  %v114 = vshra.s32 %v17, 1
  %v115 = vshra.s32 %v18, 1
  %v116 = vshra.s32 %v19, 1
  %v117 = vand.u32 %v113, 1
  %v118 = vand.u32 %v114, 1
  %v119 = vand.u32 %v115, 1
  %v120 = vand.u32 %v116, 1
  %v121 = vcvt.s32.f32 %v117
  %v122 = vcvt.s32.f32 %v118
  %v123 = vcvt.s32.f32 %v119
  %v124 = vcvt.s32.f32 %v120
  %s125 = scalar_lea.vmem %s2, 1
  %v126 = vld [vmem:[%s125] sm:$0x1]
  %v128 = vlaneseq
  %v129 = vshrl.u32 %v128, 7
  %v130 = vsub.s32 0, %v129
  %v131 = vrot.slane %v126, %v130
  %133 = vmatprep.subr.mxu0 0.0
  %134 = vmatpush1.msra.mxu0 0.0
  %135 = vmatprep.subr.mxu0 0.0
  %136 = vmatpush1.msra.mxu0 0.0
  %137 = vmatprep.subr.mxu0 0.0
  %138 = vmatpush1.msra.mxu0 0.0
  %139 = vmatprep.subr.mxu0 0.0
  %140 = vmatpush1.msra.mxu0 0.0
  %141 = vmatprep.subr.mxu0 0.0
  %142 = vmatpush1.msra.mxu0 0.0
  %143 = vmatprep.subr.mxu0 0.0
  %144 = vmatpush1.msra.mxu0 0.0
  %145 = vmatprep.subr.mxu0 0.0
  %146 = vmatpush1.msra.mxu0 0.0
  %147 = vmatprep.subr.mxu0 0.0
  %148 = vmatpush1.msra.mxu0 0.0
  %149 = vmatprep.subr.mxu0 0.0
  %150 = vmatpush1.msra.mxu0 0.0
  %151 = vmatprep.subr.mxu0 0.0
  %152 = vmatpush1.msra.mxu0 0.0
  %153 = vmatprep.subr.mxu0 0.0
  %154 = vmatpush1.msra.mxu0 0.0
  %155 = vmatprep.subr.mxu0 0.0
  %156 = vmatpush1.msra.mxu0 0.0
  %157 = vmatprep.subr.mxu0 0.0
  %158 = vmatpush1.msra.mxu0 %v124
  %159 = vmatprep.subr.mxu0 0.0
  %160 = vmatpush1.msra.mxu0 %v123
  %161 = vmatprep.subr.mxu0 0.0
  %162 = vmatpush1.msra.mxu0 %v122
  %163 = vmatprep.subr.mxu0 0.0
  %164 = vmatpush1.msra.mxu0 %v121
  %165 = vmatprep.subr.mxu0 0.0
  %166 = vmatpush2.msra.mxu0 0.0
  %167 = vmatprep.subr.mxu0 0.0
  %168 = vmatpush2.msra.mxu0 0.0
  %169 = vmatprep.subr.mxu0 0.0
  %170 = vmatpush2.msra.mxu0 0.0
  %171 = vmatprep.subr.mxu0 0.0
  %172 = vmatpush2.msra.mxu0 0.0
  %173 = vmatprep.subr.mxu0 0.0
  %174 = vmatpush2.msra.mxu0 0.0
  %175 = vmatprep.subr.mxu0 0.0
  %176 = vmatpush2.msra.mxu0 0.0
  %177 = vmatprep.subr.mxu0 0.0
  %178 = vmatpush2.msra.mxu0 0.0
  %179 = vmatprep.subr.mxu0 0.0
  %180 = vmatpush2.msra.mxu0 0.0
  %181 = vmatprep.subr.mxu0 0.0
  %182 = vmatpush2.msra.mxu0 0.0
  %183 = vmatprep.subr.mxu0 0.0
  %184 = vmatpush2.msra.mxu0 0.0
  %185 = vmatprep.subr.mxu0 0.0
  %186 = vmatpush2.msra.mxu0 0.0
  %187 = vmatprep.subr.mxu0 0.0
  %188 = vmatpush2.msra.mxu0 0.0
  %189 = vmatprep.subr.mxu0 0.0
  %190 = vmatpush2.msra.mxu0 0.0
  %191 = vmatprep.subr.mxu0 0.0
  %192 = vmatpush2.msra.mxu0 0.0
  %193 = vmatprep.subr.mxu0 0.0
  %194 = vmatpush2.msra.mxu0 0.0
  %195 = vmatprep.subr.mxu0 0.0
  %196 = vmatpush2.msra.mxu0 0.0
  %197 = vmatprep.mubr.f32.mxu0 0.0
  %198 = vmatmul.mubr.f32.gmra.mxu0 %v37
  %v199 = vpop.f32.mrf.mxu0
  %v200 = vadd.f32 %v131, %v199
  %v201 = vpop.f32.mrf.mxu0
  %202 = vdwg.mxu0
  %v203 = vmul.f32 %v200, 255.0
  %v204 = vround.ne.pseudo %v203
  %v205 = vmul.f32 %v204, 0.007843138
  %v206 = vadd.f32 %v112, %v205
  %v207 = vshra.s32 %v16, 2
  %v208 = vshra.s32 %v17, 2
  %v209 = vshra.s32 %v18, 2
  %v210 = vshra.s32 %v19, 2
  %v211 = vand.u32 %v207, 1
  %v212 = vand.u32 %v208, 1
  %v213 = vand.u32 %v209, 1
  %v214 = vand.u32 %v210, 1
  %v215 = vcvt.s32.f32 %v211
  %v216 = vcvt.s32.f32 %v212
  %v217 = vcvt.s32.f32 %v213
  %v218 = vcvt.s32.f32 %v214
  %s219 = scalar_lea.vmem %s2, 2
  %v220 = vld [vmem:[%s219] sm:$0x1]
  %v222 = vlaneseq
  %v223 = vshrl.u32 %v222, 7
  %v224 = vsub.s32 0, %v223
  %v225 = vrot.slane %v220, %v224
  %227 = vmatprep.subr.mxu0 0.0
  %228 = vmatpush1.msra.mxu0 0.0
  %229 = vmatprep.subr.mxu0 0.0
  %230 = vmatpush1.msra.mxu0 0.0
  %231 = vmatprep.subr.mxu0 0.0
  %232 = vmatpush1.msra.mxu0 0.0
  %233 = vmatprep.subr.mxu0 0.0
  %234 = vmatpush1.msra.mxu0 0.0
  %235 = vmatprep.subr.mxu0 0.0
  %236 = vmatpush1.msra.mxu0 0.0
  %237 = vmatprep.subr.mxu0 0.0
  %238 = vmatpush1.msra.mxu0 0.0
  %239 = vmatprep.subr.mxu0 0.0
  %240 = vmatpush1.msra.mxu0 0.0
  %241 = vmatprep.subr.mxu0 0.0
  %242 = vmatpush1.msra.mxu0 0.0
  %243 = vmatprep.subr.mxu0 0.0
  %244 = vmatpush1.msra.mxu0 0.0
  %245 = vmatprep.subr.mxu0 0.0
  %246 = vmatpush1.msra.mxu0 0.0
  %247 = vmatprep.subr.mxu0 0.0
  %248 = vmatpush1.msra.mxu0 0.0
  %249 = vmatprep.subr.mxu0 0.0
  %250 = vmatpush1.msra.mxu0 0.0
  %251 = vmatprep.subr.mxu0 0.0
  %252 = vmatpush1.msra.mxu0 %v218
  %253 = vmatprep.subr.mxu0 0.0
  %254 = vmatpush1.msra.mxu0 %v217
  %255 = vmatprep.subr.mxu0 0.0
  %256 = vmatpush1.msra.mxu0 %v216
  %257 = vmatprep.subr.mxu0 0.0
  %258 = vmatpush1.msra.mxu0 %v215
  %259 = vmatprep.subr.mxu0 0.0
  %260 = vmatpush2.msra.mxu0 0.0
  %261 = vmatprep.subr.mxu0 0.0
  %262 = vmatpush2.msra.mxu0 0.0
  %263 = vmatprep.subr.mxu0 0.0
  %264 = vmatpush2.msra.mxu0 0.0
  %265 = vmatprep.subr.mxu0 0.0
  %266 = vmatpush2.msra.mxu0 0.0
  %267 = vmatprep.subr.mxu0 0.0
  %268 = vmatpush2.msra.mxu0 0.0
  %269 = vmatprep.subr.mxu0 0.0
  %270 = vmatpush2.msra.mxu0 0.0
  %271 = vmatprep.subr.mxu0 0.0
  %272 = vmatpush2.msra.mxu0 0.0
  %273 = vmatprep.subr.mxu0 0.0
  %274 = vmatpush2.msra.mxu0 0.0
  %275 = vmatprep.subr.mxu0 0.0
  %276 = vmatpush2.msra.mxu0 0.0
  %277 = vmatprep.subr.mxu0 0.0
  %278 = vmatpush2.msra.mxu0 0.0
  %279 = vmatprep.subr.mxu0 0.0
  %280 = vmatpush2.msra.mxu0 0.0
  %281 = vmatprep.subr.mxu0 0.0
  %282 = vmatpush2.msra.mxu0 0.0
  %283 = vmatprep.subr.mxu0 0.0
  %284 = vmatpush2.msra.mxu0 0.0
  %285 = vmatprep.subr.mxu0 0.0
  %286 = vmatpush2.msra.mxu0 0.0
  %287 = vmatprep.subr.mxu0 0.0
  %288 = vmatpush2.msra.mxu0 0.0
  %289 = vmatprep.subr.mxu0 0.0
  %290 = vmatpush2.msra.mxu0 0.0
  %291 = vmatprep.mubr.f32.mxu0 0.0
  %292 = vmatmul.mubr.f32.gmra.mxu0 %v37
  %v293 = vpop.f32.mrf.mxu0
  %v294 = vadd.f32 %v225, %v293
  %v295 = vpop.f32.mrf.mxu0
  %296 = vdwg.mxu0
  %v297 = vmul.f32 %v294, 255.0
  %v298 = vround.ne.pseudo %v297
  %v299 = vmul.f32 %v298, 0.015686275
  %v300 = vadd.f32 %v206, %v299
  %v301 = vshra.s32 %v16, 3
  %v302 = vshra.s32 %v17, 3
  %v303 = vshra.s32 %v18, 3
  %v304 = vshra.s32 %v19, 3
  %v305 = vand.u32 %v301, 1
  %v306 = vand.u32 %v302, 1
  %v307 = vand.u32 %v303, 1
  %v308 = vand.u32 %v304, 1
  %v309 = vcvt.s32.f32 %v305
  %v310 = vcvt.s32.f32 %v306
  %v311 = vcvt.s32.f32 %v307
  %v312 = vcvt.s32.f32 %v308
  %s313 = scalar_lea.vmem %s2, 3
  %v314 = vld [vmem:[%s313] sm:$0x1]
  %v316 = vlaneseq
  %v317 = vshrl.u32 %v316, 7
  %v318 = vsub.s32 0, %v317
  %v319 = vrot.slane %v314, %v318
  %321 = vmatprep.subr.mxu0 0.0
  %322 = vmatpush1.msra.mxu0 0.0
  %323 = vmatprep.subr.mxu0 0.0
  %324 = vmatpush1.msra.mxu0 0.0
  %325 = vmatprep.subr.mxu0 0.0
  %326 = vmatpush1.msra.mxu0 0.0
  %327 = vmatprep.subr.mxu0 0.0
  %328 = vmatpush1.msra.mxu0 0.0
  %329 = vmatprep.subr.mxu0 0.0
  %330 = vmatpush1.msra.mxu0 0.0
  %331 = vmatprep.subr.mxu0 0.0
  %332 = vmatpush1.msra.mxu0 0.0
  %333 = vmatprep.subr.mxu0 0.0
  %334 = vmatpush1.msra.mxu0 0.0
  %335 = vmatprep.subr.mxu0 0.0
  %336 = vmatpush1.msra.mxu0 0.0
  %337 = vmatprep.subr.mxu0 0.0
  %338 = vmatpush1.msra.mxu0 0.0
  %339 = vmatprep.subr.mxu0 0.0
  %340 = vmatpush1.msra.mxu0 0.0
  %341 = vmatprep.subr.mxu0 0.0
  %342 = vmatpush1.msra.mxu0 0.0
  %343 = vmatprep.subr.mxu0 0.0
  %344 = vmatpush1.msra.mxu0 0.0
  %345 = vmatprep.subr.mxu0 0.0
  %346 = vmatpush1.msra.mxu0 %v312
  %347 = vmatprep.subr.mxu0 0.0
  %348 = vmatpush1.msra.mxu0 %v311
  %349 = vmatprep.subr.mxu0 0.0
  %350 = vmatpush1.msra.mxu0 %v310
  %351 = vmatprep.subr.mxu0 0.0
  %352 = vmatpush1.msra.mxu0 %v309
  %353 = vmatprep.subr.mxu0 0.0
  %354 = vmatpush2.msra.mxu0 0.0
  %355 = vmatprep.subr.mxu0 0.0
  %356 = vmatpush2.msra.mxu0 0.0
  %357 = vmatprep.subr.mxu0 0.0
  %358 = vmatpush2.msra.mxu0 0.0
  %359 = vmatprep.subr.mxu0 0.0
  %360 = vmatpush2.msra.mxu0 0.0
  %361 = vmatprep.subr.mxu0 0.0
  %362 = vmatpush2.msra.mxu0 0.0
  %363 = vmatprep.subr.mxu0 0.0
  %364 = vmatpush2.msra.mxu0 0.0
  %365 = vmatprep.subr.mxu0 0.0
  %366 = vmatpush2.msra.mxu0 0.0
  %367 = vmatprep.subr.mxu0 0.0
  %368 = vmatpush2.msra.mxu0 0.0
  %369 = vmatprep.subr.mxu0 0.0
  %370 = vmatpush2.msra.mxu0 0.0
  %371 = vmatprep.subr.mxu0 0.0
  %372 = vmatpush2.msra.mxu0 0.0
  %373 = vmatprep.subr.mxu0 0.0
  %374 = vmatpush2.msra.mxu0 0.0
  %375 = vmatprep.subr.mxu0 0.0
  %376 = vmatpush2.msra.mxu0 0.0
  %377 = vmatprep.subr.mxu0 0.0
  %378 = vmatpush2.msra.mxu0 0.0
  %379 = vmatprep.subr.mxu0 0.0
  %380 = vmatpush2.msra.mxu0 0.0
  %381 = vmatprep.subr.mxu0 0.0
  %382 = vmatpush2.msra.mxu0 0.0
  %383 = vmatprep.subr.mxu0 0.0
  %384 = vmatpush2.msra.mxu0 0.0
  %385 = vmatprep.mubr.f32.mxu0 0.0
  %386 = vmatmul.mubr.f32.gmra.mxu0 %v37
  %v387 = vpop.f32.mrf.mxu0
  %v388 = vadd.f32 %v319, %v387
  %v389 = vpop.f32.mrf.mxu0
  %390 = vdwg.mxu0
  %v391 = vmul.f32 %v388, 255.0
  %v392 = vround.ne.pseudo %v391
  %v393 = vmul.f32 %v392, 0.03137255
  %v394 = vadd.f32 %v300, %v393
  %395 = vst [vmem:[%s3] sm:$0xff] %v394
  // Predicated region
  $region14: #{bitsliced_linear_adc.1} parent=0 // pred_check
    _
  $region15: #{bitsliced_linear_adc.1} parent=0 // pred_check_branch
    %397 = sbr.rel (0) target = $region17
  $region16: #{bitsliced_linear_adc.1} parent=0 // pred_region
    _
  $region17: #{bitsliced_linear_adc.1} parent=0 // pred_fallthru
    _
  // Predicated region
  $region18: #{bitsliced_linear_adc.1} parent=0 // pred_check
    _
  $region19: #{bitsliced_linear_adc.1} parent=0 // pred_check_branch
    %399 = sbr.rel (0) target = $region21
  $region20: #{bitsliced_linear_adc.1} parent=0 // pred_region
    _
  $region21: #{bitsliced_linear_adc.1} parent=0 // pred_fallthru
    _

</llo_original>
